<compile_context>
chip_gen: v7x
topology: tpu7x:2x2x1
jax: 0.10.0
libtpu: 0.0.40
codegen_flags: <defaults>
</compile_context>

<pallas_src>
import jax
import jax.numpy as jnp
from jax.experimental import pallas as pl
from jax.experimental.pallas import tpu as pltpu


def _round_up(x, m):
    return ((x + m - 1) // m) * m


def _round_down(x, m):
    return max(m, (x // m) * m)


def _vmem_config():
    """Return (vmem_limit_bytes, per-step tile budget, big_vmem?) for this chip."""
    try:
        cap = int(pltpu.get_tpu_info().vmem_capacity_bytes)
    except Exception:
        cap = 64 * 1024 * 1024  # conservative fallback (v7x-sized)
    if cap >= 100 * 1024 * 1024:                      # v5e / v6e: 128 MiB / core
        return 64 * 1024 * 1024, 48 * 1024 * 1024, True
    return 44 * 1024 * 1024, 28 * 1024 * 1024, False  # v7x: 64 MiB / core


def _tile_vmem_bytes(tm, tn, tk, in_isz, out_isz, multi_k):
    """Rough double-buffered VMEM footprint for one grid step."""
    x_b = 2 * tm * tk * in_isz            # double-buffered x tile
    w_b = 2 * tk * tn * in_isz            # double-buffered W tile
    b_b = 2 * tn * 4                      # bias tile (f32)
    o_b = 2 * tm * tn * out_isz           # double-buffered out tile
    a_b = tm * tn * 4 if multi_k else 0   # f32 accumulator scratch
    return x_b + w_b + b_b + o_b + a_b


def _select_tiles(M, N, K, in_isz, out_isz, budget, big_vmem):
    """Pick (tm, tn, tk).  Prefer a single K step (tk == K); shrink tn then tm
    before splitting K so the weight stays resident across the inner loop."""
    tm_cap = 256
    tn_cap = 1024 if big_vmem else 512

    # --- preferred: single K step, no accumulator, no K padding ------------
    tm = M if M <= tm_cap else tm_cap
    tn = N if N <= tn_cap else tn_cap
    while _tile_vmem_bytes(tm, tn, K, in_isz, out_isz, False) > budget:
        if tn > 128:
            tn = _round_down(tn // 2, 128)   # shrink the N tile first
        elif tm > 8:
            tm = _round_down(tm // 2, 8)     # ... then the M tile
        else:
            break
    if _tile_vmem_bytes(tm, tn, K, in_isz, out_isz, False) <= budget:
        return tm, tn, K

    # --- fallback: split the reduction (very large K).  tk is a 256-multiple
    # so it stays MXU-aligned on v6e/v7x and 128-aligned for v5e. -----------
    tm = M if M <= tm_cap else tm_cap
    tn = N if N <= 512 else 512
    tk = _round_up(K, 256)
    while tk > 256 and _tile_vmem_bytes(tm, tn, tk, in_isz, out_isz, True) > budget:
        tk = _round_up(tk // 2, 256)
    while _tile_vmem_bytes(tm, tn, tk, in_isz, out_isz, True) > budget:
        if tn > 128:
            tn = _round_down(tn // 2, 128)
        elif tm > 8:
            tm = _round_down(tm // 2, 8)
        else:
            break
    return tm, tn, tk


def _conv1d_kernel_1k(x_ref, w_ref, b_ref, o_ref):
    """Whole K reduction in one MXU pass: no accumulator scratch, bias fused
    into the epilogue add, single store of the output tile."""
    acc = jnp.dot(x_ref[...], w_ref[...], preferred_element_type=jnp.float32)
    o_ref[...] = (acc + b_ref[...]).astype(o_ref.dtype)


def _conv1d_kernel_mk(x_ref, w_ref, b_ref, o_ref, acc_ref):
    """Multi-step K reduction (k is the innermost grid axis).  The ends of the
    reduction are fused: no separate accumulator-init store at k==0 and no
    accumulator re-read after a final += at the last step."""
    k = pl.program_id(2)
    nk = pl.num_programs(2)
    part = jnp.dot(x_ref[...], w_ref[...], preferred_element_type=jnp.float32)

    @pl.when(k == 0)
    def _():
        acc_ref[...] = part + b_ref[...]

    @pl.when(jnp.logical_and(k > 0, k < nk - 1))
    def _():
        acc_ref[...] = acc_ref[...] + part

    @pl.when(k == nk - 1)
    def _():
        o_ref[...] = (acc_ref[...] + part).astype(o_ref.dtype)


def conv1d(x, weight, bias, *, tm=None, tn=None, tk=None, compute_dtype=None):
    """y = x @ weight + bias   (x: (..., nx), weight: (nx, nf), bias: (nf,))."""
    orig_shape = x.shape
    nx = orig_shape[-1]
    nf = weight.shape[1]
    out_dtype = x.dtype

    x2d = x.reshape(-1, nx)
    w = weight
    if compute_dtype is not None:
        # bf16 fast-MXU path on v6e/v7x; accumulation and bias stay f32 and
        # the output keeps x.dtype.  For repeated calls, cast the weight once
        # at init time (as done in the demo) so W is not re-read per call.
        x2d = x2d.astype(compute_dtype)
        w = w.astype(compute_dtype)

    M, K = x2d.shape
    N = nf
    in_isz = jnp.dtype(x2d.dtype).itemsize
    out_isz = jnp.dtype(out_dtype).itemsize

    vmem_limit, budget, big_vmem = _vmem_config()
    a_tm, a_tn, a_tk = _select_tiles(M, N, K, in_isz, out_isz, budget, big_vmem)
    tm = a_tm if tm is None else tm
    tn = a_tn if tn is None else tn
    tk = a_tk if tk is None else tk

    num_k = 1 if tk >= K else pl.cdiv(K, tk)
    if num_k == 1:
        tk = K          # full-dim K block: no padding, no accumulator needed
        K_eff = K
    else:
        # Multi-step reduction: K must be zero-padded to a tile multiple
        # (zero padding is numerically exact).  M and N are never padded --
        # Pallas's masked edge-block DMA handles the ragged last tiles.
        K_eff = num_k * tk
        if K_eff != K:
            x2d = jnp.pad(x2d, ((0, 0), (0, K_eff - K)))
            w = jnp.pad(w, ((0, K_eff - K), (0, 0)))

    bias2d = bias.astype(jnp.float32).reshape(1, N)

    gm = pl.cdiv(M, tm)
    gn = pl.cdiv(N, tn)
    # Megacore (v7x): put the parallel axis with more blocks first so both
    # TensorCores get work.  The operand whose block index is constant over
    # the inner parallel axis stays resident in VMEM across that loop.
    lead_m = gm >= gn

    if num_k == 1:
        kernel = _conv1d_kernel_1k
        scratch = []
        if lead_m:
            grid = (gm, gn)
            x_map = lambda i, j: (i, 0)
            w_map = lambda i, j: (0, j)
            b_map = lambda i, j: (0, j)
            o_map = lambda i, j: (i, j)
        else:
            grid = (gn, gm)
            x_map = lambda j, i: (i, 0)
            w_map = lambda j, i: (0, j)
            b_map = lambda j, i: (0, j)
            o_map = lambda j, i: (i, j)
        semantics = ("parallel", "parallel")
    else:
        kernel = _conv1d_kernel_mk
        scratch = [pltpu.VMEM((tm, tn), jnp.float32)]
        if lead_m:
            grid = (gm, gn, num_k)
            x_map = lambda i, j, k: (i, k)
            w_map = lambda i, j, k: (k, j)
            b_map = lambda i, j, k: (0, j)
            o_map = lambda i, j, k: (i, j)
        else:
            grid = (gn, gm, num_k)
            x_map = lambda j, i, k: (i, k)
            w_map = lambda j, i, k: (k, j)
            b_map = lambda j, i, k: (0, j)
            o_map = lambda j, i, k: (i, j)
        semantics = ("parallel", "parallel", "arbitrary")

    # Approximate the *actual* HBM traffic for XLA's scheduler: in the chosen
    # grid order one operand streams once, the other re-streams per block of
    # the leading axis (both re-stream when K is split).
    if num_k == 1:
        x_reads, w_reads = (1, gm) if lead_m else (gn, 1)
    else:
        x_reads, w_reads = gn, gm
    cost = pl.CostEstimate(
        flops=2 * M * N * K,
        transcendentals=0,
        bytes_accessed=int(x_reads * M * K_eff * in_isz
                           + w_reads * K_eff * N * in_isz
                           + N * 4 + M * N * out_isz),
    )

    out2d = pl.pallas_call(
        kernel,
        out_shape=jax.ShapeDtypeStruct((M, N), out_dtype),
        grid_spec=pltpu.PrefetchScalarGridSpec(
            num_scalar_prefetch=0,
            grid=grid,
            in_specs=[
                pl.BlockSpec((tm, tk), x_map),   # x tile
                pl.BlockSpec((tk, tn), w_map),   # W tile
                pl.BlockSpec((1, tn), b_map),    # bias tile (f32)
            ],
            out_specs=pl.BlockSpec((tm, tn), o_map),
            scratch_shapes=scratch,
        ),
        compiler_params=pltpu.CompilerParams(
            dimension_semantics=semantics,
            vmem_limit_bytes=vmem_limit,
        ),
        cost_estimate=cost,
    )(x2d, w, bias2d)

    return out2d.reshape(orig_shape[:-1] + (nf,))


if __name__ == "__main__":
    key = jax.random.PRNGKey(0)

    # ---- main shapes (mirrors Conv1D(nf, nx): w ~ N(0, 0.02), b = 0) ------
    batch, seq, nx, nf = 2, 8, 128, 256
    kx, kw = jax.random.split(key)
    weight = 0.02 * jax.random.normal(kw, (nx, nf), dtype=jnp.float32)
    bias = jnp.zeros((nf,), dtype=jnp.float32)
    x = jax.random.normal(kx, (batch, seq, nx), dtype=jnp.float32)

    y = conv1d(x, weight, bias)
    jax.block_until_ready(y)
    y_ref = (x.reshape(-1, nx) @ weight + bias).reshape(batch, seq, nf)
    assert y.shape == (batch, seq, nf)
    assert jnp.allclose(y, y_ref, atol=1e-5, rtol=1e-5)

    # ---- ragged, non-tile-aligned shapes + non-zero bias -------------------
    kx2, kw2, kb2 = jax.random.split(jax.random.PRNGKey(1), 3)
    b2, s2, nx2, nf2 = 2, 5, 96, 200
    w2 = 0.02 * jax.random.normal(kw2, (nx2, nf2), dtype=jnp.float32)
    bias2 = 0.1 * jax.random.normal(kb2, (nf2,), dtype=jnp.float32)
    x2 = jax.random.normal(kx2, (b2, s2, nx2), dtype=jnp.float32)
    y2 = conv1d(x2, w2, bias2)
    jax.block_until_ready(y2)
    y2_ref = (x2.reshape(-1, nx2) @ w2 + bias2).reshape(b2, s2, nf2)
    assert y2.shape == (b2, s2, nf2)
    assert jnp.allclose(y2, y2_ref, atol=1e-5, rtol=1e-5)

    # ---- ragged edge blocks in both M and N (no padding, masked edge DMA) --
    kx3 = jax.random.PRNGKey(2)
    x3 = jax.random.normal(kx3, (2, 136, nx2), dtype=jnp.float32)   # M = 272
    y3 = conv1d(x3, w2, bias2, tm=128, tn=128)
    jax.block_until_ready(y3)
    y3_ref = (x3.reshape(-1, nx2) @ w2 + bias2).reshape(2, 136, nf2)
    assert jnp.allclose(y3, y3_ref, atol=1e-5, rtol=1e-5)

    # ---- multi-step K reduction with exact zero K-padding ------------------
    kx4, kw4, kb4 = jax.random.split(jax.random.PRNGKey(3), 3)
    nx4, nf4 = 300, 256
    x4 = jax.random.normal(kx4, (32, nx4), dtype=jnp.float32)
    w4 = 0.02 * jax.random.normal(kw4, (nx4, nf4), dtype=jnp.float32)
    bias4 = 0.1 * jax.random.normal(kb4, (nf4,), dtype=jnp.float32)
    y4 = conv1d(x4, w4, bias4, tk=256)
    jax.block_until_ready(y4)
    y4_ref = x4 @ w4 + bias4
    assert jnp.allclose(y4, y4_ref, atol=1e-4, rtol=1e-4)

    # ---- bf16 compute path (v6e/v7x fast MXU; f32 accumulation + bias) -----
    w_bf16 = weight.astype(jnp.bfloat16)   # weight cast hoisted (done once)
    y5 = conv1d(x, w_bf16, bias, compute_dtype=jnp.bfloat16)
    jax.block_until_ready(y5)
    assert y5.dtype == x.dtype
    assert jnp.allclose(y5, y_ref, atol=2e-2, rtol=2e-2)

    print("KERNEL_OK")
</pallas_src>

<mosaic_0001>
module attributes {stable_mosaic.version = 11 : i64} {
  func.func @_conv1d_kernel_1k(%arg0: i32, %arg1: i32, %arg2: memref<16x128xf32, #tpu.memory_space<vmem>>, %arg3: memref<128x256xf32, #tpu.memory_space<vmem>>, %arg4: memref<1x256xf32, #tpu.memory_space<vmem>>, %arg5: memref<16x256xf32, #tpu.memory_space<vmem>>) attributes {dimension_semantics = [#tpu.dimension_semantics<parallel>, #tpu.dimension_semantics<parallel>], iteration_bounds = array<i64: 1, 1>, scalar_prefetch = 0 : i64, scratch_operands = 0 : i64, tpu.core_type = #tpu.core_type<tc>, window_params = [{transform_indices = @transform_0, window_bounds = array<i64: 16, 128>}, {transform_indices = @transform_1, window_bounds = array<i64: 128, 256>}, {transform_indices = @transform_2, window_bounds = array<i64: 1, 256>}, {transform_indices = @transform_3, window_bounds = array<i64: 16, 256>}]} {
    %c0 = arith.constant 0 : index
    %c0_0 = arith.constant 0 : index
    %0 = vector.load %arg2[%c0, %c0_0] : memref<16x128xf32, #tpu.memory_space<vmem>>, vector<16x128xf32>
    %c0_1 = arith.constant 0 : index
    %c0_2 = arith.constant 0 : index
    %1 = vector.load %arg3[%c0_1, %c0_2] : memref<128x256xf32, #tpu.memory_space<vmem>>, vector<128x256xf32>
    %cst = arith.constant dense<0.000000e+00> : vector<16x256xf32>
    %2 = tpu.matmul %0, %1, %cst {dimension_numbers = #tpu.dot_dimension_numbers<[1], [0], [0], [1], [0, 0, 1, 1], [], []>} : vector<16x128xf32>, vector<128x256xf32>, vector<16x256xf32> -> vector<16x256xf32>
    %c0_3 = arith.constant 0 : index
    %c0_4 = arith.constant 0 : index
    %3 = vector.load %arg4[%c0_3, %c0_4] : memref<1x256xf32, #tpu.memory_space<vmem>>, vector<1x256xf32>
    %4 = vector.broadcast %3 : vector<1x256xf32> to vector<16x256xf32>
    %5 = arith.addf %2, %4 : vector<16x256xf32>
    %c0_5 = arith.constant 0 : index
    %c0_6 = arith.constant 0 : index
    %6 = vector.load %arg5[%c0_5, %c0_6] : memref<16x256xf32, #tpu.memory_space<vmem>>, vector<16x256xf32>
    tpu.vector_store %arg5[%c0_5, %c0_6], %5 {strides = array<i32>} : memref<16x256xf32, #tpu.memory_space<vmem>>, vector<16x256xf32>,
    return
  }
  func.func @transform_0(%arg0: i32, %arg1: i32) -> (i32, i32) {
    %c0_i32 = arith.constant 0 : i32
    %c0_i32_0 = arith.constant 0 : i32
    return %arg0, %c0_i32 : i32, i32
  }
  func.func @transform_1(%arg0: i32, %arg1: i32) -> (i32, i32) {
    %c0_i32 = arith.constant 0 : i32
    %c0_i32_0 = arith.constant 0 : i32
    return %c0_i32, %arg1 : i32, i32
  }
  func.func @transform_2(%arg0: i32, %arg1: i32) -> (i32, i32) {
    %c0_i32 = arith.constant 0 : i32
    %c0_i32_0 = arith.constant 0 : i32
    return %c0_i32, %arg1 : i32, i32
  }
  func.func @transform_3(%arg0: i32, %arg1: i32) -> (i32, i32) {
    %c0_i32 = arith.constant 0 : i32
    return %arg0, %arg1 : i32, i32
  }
}

</mosaic_0001>

<llo_original>
// kernel: tpu_custom_call.1
$region0: #{tpu_custom_call.1}
  #allocation0 [shape = 'u32[]', space=smem, size = 0x4, offset = 0x4, fixed_abs, tag = 'smem constant byte address 0x4 - core index']
  #allocation1 [shape = 'u32[144,128]{1,0:T(1,128)}', space=vmem, size = 0x12000, scoped, tag = 'internal scratch']
  %s0 = inlined_call_operand.hbm [shape: f32[16,128], index: 0, kind: input, shape index: {}]
  %s1 = inlined_call_operand.hbm [shape: f32[128,256], index: 1, kind: input, shape index: {}]
  %s2 = inlined_call_operand.vmem [shape: f32[1,256], index: 2, kind: input, shape index: {}]
  %s3 = inlined_call_operand.hbm [shape: f32[16,256], index: 3, kind: output, shape index: {}]
  %s4 = sld [smem:[#allocation0]]
  $region30: #{tpu_custom_call.1} parent=0
    _
  %s6 = ssub.s32 1, %s4
  %s7 = scalar_select 0, %s6, %s4
  $region1: #{tpu_custom_call.1} parent=0
    #allocation2 [shape = 'u8[8192]{0}', space=vmem, size = 0x2000, scoped, tag = 'input window, operand 0, single buffered']
    #allocation3 [shape = 's32[1]{0}', space=sflag, size = 0x4, scoped, tag = 'scoped memory for tpu_custom_call.1']
    #allocation4 [shape = 's32[1]{0}', space=sflag, size = 0x4, scoped, tag = 'scoped memory for tpu_custom_call.1']
    #allocation5 [shape = 'u8[131072]{0}', space=vmem, size = 0x20000, scoped, tag = 'input window, operand 1, single buffered']
    #allocation6 [shape = 's32[1]{0}', space=sflag, size = 0x4, scoped, tag = 'scoped memory for tpu_custom_call.1']
    #allocation7 [shape = 'u8[16384]{0}', space=vmem, size = 0x4000, scoped, tag = 'output window, operand 0, single buffered']
    %8 = vsyncpa [#allocation3], 0
    %9 = vsyncpa [#allocation6], 0
    %10 = vsyncpa [#allocation4], 0
    // Predicated region
    $region2: #{tpu_custom_call.1} parent=1 // pred_check
      _
    $region3: #{tpu_custom_call.1} parent=1 // pred_check_branch
      %12 = sbr.rel (0) target = $region5
    $region4: #{tpu_custom_call.1} parent=1 // pred_region
      %s14 = ssub.s32 256, 256
      %15 = vsyncadd [#allocation3], %s14
      %s16 = sshll.u32 [#allocation2], 4
      %s17 = int_to_ptr.vmem [resolvable:$true] %s16
      %22 = dma.hbm_to_vmem [thread:$0]  %s0, 256, %s17, [#allocation3], 128, 128, 8
    $region5: #{tpu_custom_call.1} parent=1 // pred_fallthru
      _
    // Predicated region
    $region6: #{tpu_custom_call.1} parent=1 // pred_check
      _
    $region7: #{tpu_custom_call.1} parent=1 // pred_check_branch
      %24 = sbr.rel (0) target = $region9
    $region8: #{tpu_custom_call.1} parent=1 // pred_region
      %s26 = ssub.s32 4096, 4096
      %27 = vsyncadd [#allocation6], %s26
      %s28 = sshll.u32 [#allocation5], 4
      %s29 = int_to_ptr.vmem [resolvable:$true] %s28
      %34 = dma.hbm_to_vmem [thread:$0]  %s1, 4096, %s29, [#allocation6], 256, 256, 16
    $region9: #{tpu_custom_call.1} parent=1 // pred_fallthru
      _
    // Predicated region
    $region10: #{tpu_custom_call.1} parent=1 // pred_check
      _
    $region11: #{tpu_custom_call.1} parent=1 // pred_check_branch
      %36 = sbr.rel (0) target = $region13
    $region12: #{tpu_custom_call.1} parent=1 // pred_region
      _
    $region13: #{tpu_custom_call.1} parent=1 // pred_fallthru
      _
    // Predicated region
    $region14: #{tpu_custom_call.1} parent=1 // pred_check
      _
    $region15: #{tpu_custom_call.1} parent=1 // pred_check_branch
      %38 = sbr.rel (0) target = $region17
    $region16: #{tpu_custom_call.1} parent=1 // pred_region
      %39 = dma.done [#allocation3], 256
    $region17: #{tpu_custom_call.1} parent=1 // pred_fallthru
      _
    // Predicated region
    $region18: #{tpu_custom_call.1} parent=1 // pred_check
      _
    $region19: #{tpu_custom_call.1} parent=1 // pred_check_branch
      %41 = sbr.rel (0) target = $region21
    $region20: #{tpu_custom_call.1} parent=1 // pred_region
      %42 = dma.done [#allocation6], 4096
    $region21: #{tpu_custom_call.1} parent=1 // pred_fallthru
      _
    %v43 = vld [vmem:[#allocation2] sm:$0xff]
    %v44 = vld [vmem:[#allocation2 + $0x8] sm:$0xff]
    %v45 = vld [vmem:[#allocation5] sm:$0xff]
    %v46 = vld [vmem:[#allocation5 + $0x8] sm:$0xff]
    %v47 = vld [vmem:[#allocation5 + $0x10] sm:$0xff]
    %v48 = vld [vmem:[#allocation5 + $0x18] sm:$0xff]
    %v49 = vld [vmem:[#allocation5 + $0x20] sm:$0xff]
    %v50 = vld [vmem:[#allocation5 + $0x28] sm:$0xff]
    %v51 = vld [vmem:[#allocation5 + $0x30] sm:$0xff]
    %v52 = vld [vmem:[#allocation5 + $0x38] sm:$0xff]
    %v53 = vld [vmem:[#allocation5 + $0x40] sm:$0xff]
    %v54 = vld [vmem:[#allocation5 + $0x48] sm:$0xff]
    %v55 = vld [vmem:[#allocation5 + $0x50] sm:$0xff]
    %v56 = vld [vmem:[#allocation5 + $0x58] sm:$0xff]
    %v57 = vld [vmem:[#allocation5 + $0x60] sm:$0xff]
    %v58 = vld [vmem:[#allocation5 + $0x68] sm:$0xff]
    %v59 = vld [vmem:[#allocation5 + $0x70] sm:$0xff]
    %v60 = vld [vmem:[#allocation5 + $0x78] sm:$0xff]
    %v61 = vld [vmem:[#allocation5 + $0x80] sm:$0xff]
    %v62 = vld [vmem:[#allocation5 + $0x88] sm:$0xff]
    %v63 = vld [vmem:[#allocation5 + $0x90] sm:$0xff]
    %v64 = vld [vmem:[#allocation5 + $0x98] sm:$0xff]
    %v65 = vld [vmem:[#allocation5 + $0xa0] sm:$0xff]
    %v66 = vld [vmem:[#allocation5 + $0xa8] sm:$0xff]
    %v67 = vld [vmem:[#allocation5 + $0xb0] sm:$0xff]
    %v68 = vld [vmem:[#allocation5 + $0xb8] sm:$0xff]
    %v69 = vld [vmem:[#allocation5 + $0xc0] sm:$0xff]
    %v70 = vld [vmem:[#allocation5 + $0xc8] sm:$0xff]
    %v71 = vld [vmem:[#allocation5 + $0xd0] sm:$0xff]
    %v72 = vld [vmem:[#allocation5 + $0xd8] sm:$0xff]
    %v73 = vld [vmem:[#allocation5 + $0xe0] sm:$0xff]
    %v74 = vld [vmem:[#allocation5 + $0xe8] sm:$0xff]
    %v75 = vld [vmem:[#allocation5 + $0xf0] sm:$0xff]
    %v76 = vld [vmem:[#allocation5 + $0xf8] sm:$0xff]
    %v77 = vld [vmem:[%s2] sm:$0x3]
    %v79 = vlaneseq
    %v80 = vshrl.u32 %v79, 7
    %v81 = vsub.s32 0, %v80
    %v82 = vrot.slane %v77, %v81
    %v83 = vlaneseq
    %v84 = vshrl.u32 %v83, 7
    %v85 = vsub.s32 1, %v84
    %v86 = vrot.slane %v77, %v85
    %89 = vmatprep.subr.mxu0 %v46
    %90 = vmatpush1.msra.mxu0 %v45
    %91 = vmatprep.subr.mxu0 %v48
    %92 = vmatpush1.msra.mxu0 %v47
    %93 = vmatprep.subr.mxu0 %v50
    %94 = vmatpush1.msra.mxu0 %v49
    %95 = vmatprep.subr.mxu0 %v52
    %96 = vmatpush1.msra.mxu0 %v51
    %97 = vmatprep.subr.mxu0 %v54
    %98 = vmatpush1.msra.mxu0 %v53
    %99 = vmatprep.subr.mxu0 %v56
    %100 = vmatpush1.msra.mxu0 %v55
    %101 = vmatprep.subr.mxu0 %v58
    %102 = vmatpush1.msra.mxu0 %v57
    %103 = vmatprep.subr.mxu0 %v60
    %104 = vmatpush1.msra.mxu0 %v59
    %105 = vmatprep.subr.mxu0 %v62
    %106 = vmatpush1.msra.mxu0 %v61
    %107 = vmatprep.subr.mxu0 %v64
    %108 = vmatpush1.msra.mxu0 %v63
    %109 = vmatprep.subr.mxu0 %v66
    %110 = vmatpush1.msra.mxu0 %v65
    %111 = vmatprep.subr.mxu0 %v68
    %112 = vmatpush1.msra.mxu0 %v67
    %113 = vmatprep.subr.mxu0 %v70
    %114 = vmatpush1.msra.mxu0 %v69
    %115 = vmatprep.subr.mxu0 %v72
    %116 = vmatpush1.msra.mxu0 %v71
    %117 = vmatprep.subr.mxu0 %v74
    %118 = vmatpush1.msra.mxu0 %v73
    %119 = vmatprep.subr.mxu0 %v76
    %120 = vmatpush1.msra.mxu0 %v75
    %121 = vmatprep.subr.mxu0 0.0
    %122 = vmatpush1.msra.mxu0 0.0
    %123 = vmatprep.subr.mxu0 0.0
    %124 = vmatpush1.msra.mxu0 0.0
    %125 = vmatprep.subr.mxu0 0.0
    %126 = vmatpush1.msra.mxu0 0.0
    %127 = vmatprep.subr.mxu0 0.0
    %128 = vmatpush1.msra.mxu0 0.0
    %129 = vmatprep.subr.mxu0 0.0
    %130 = vmatpush1.msra.mxu0 0.0
    %131 = vmatprep.subr.mxu0 0.0
    %132 = vmatpush1.msra.mxu0 0.0
    %133 = vmatprep.subr.mxu0 0.0
    %134 = vmatpush1.msra.mxu0 0.0
    %135 = vmatprep.subr.mxu0 0.0
    %136 = vmatpush1.msra.mxu0 0.0
    %137 = vmatprep.subr.mxu0 0.0
    %138 = vmatpush1.msra.mxu0 0.0
    %139 = vmatprep.subr.mxu0 0.0
    %140 = vmatpush1.msra.mxu0 0.0
    %141 = vmatprep.subr.mxu0 0.0
    %142 = vmatpush1.msra.mxu0 0.0
    %143 = vmatprep.subr.mxu0 0.0
    %144 = vmatpush1.msra.mxu0 0.0
    %145 = vmatprep.subr.mxu0 0.0
    %146 = vmatpush1.msra.mxu0 0.0
    %147 = vmatprep.subr.mxu0 0.0
    %148 = vmatpush1.msra.mxu0 0.0
    %149 = vmatprep.subr.mxu0 0.0
    %150 = vmatpush1.msra.mxu0 0.0
    %151 = vmatprep.subr.mxu0 0.0
    %152 = vmatpush1.msra.mxu0 0.0
    %153 = vmatprep.mubr.f32.mxu0 0.0
    %154 = vmatmul.mubr.f32.gmra.mrb[0].mxu0 %v43
    %v155 = vpop.f32.mrb[0].mxu0
    %v156 = vadd.f32 %v82, %v155
    %v157 = vpop.f32.mrb[0].mxu0
    %v158 = vadd.f32 %v86, %v157
    %159 = vmatprep.mubr.f32.mxu0 0.0
    %160 = vmatmul.mubr.f32.gmra.mrb[0].mxu0 %v44
    %v161 = vpop.f32.mrb[0].mxu0
    %v162 = vadd.f32 %v82, %v161
    %v163 = vpop.f32.mrb[0].mxu0
    %v164 = vadd.f32 %v86, %v163
    %165 = vdwg.mxu0
    %166 = vst [vmem:[#allocation7] sm:$0xff] %v156
    %167 = vst [vmem:[#allocation7 + $0x8] sm:$0xff] %v158
    %168 = vst [vmem:[#allocation7 + $0x10] sm:$0xff] %v162
    %169 = vst [vmem:[#allocation7 + $0x18] sm:$0xff] %v164
    // Predicated region
    $region22: #{tpu_custom_call.1} parent=1 // pred_check
      _
    $region23: #{tpu_custom_call.1} parent=1 // pred_check_branch
      %171 = sbr.rel (0) target = $region25
    $region24: #{tpu_custom_call.1} parent=1 // pred_region
      %s173 = ssub.s32 512, 512
      %174 = vsyncadd [#allocation4], %s173
      %s175 = sshll.u32 [#allocation7], 4
      %s176 = int_to_ptr.vmem [resolvable:$true] %s175
      %181 = dma.vmem_to_hbm [thread:$0]  %s176, 512, %s3, [#allocation4], 256, 256, 16
    $region25: #{tpu_custom_call.1} parent=1 // pred_fallthru
      _
    // Predicated region
    $region26: #{tpu_custom_call.1} parent=1 // pred_check
      _
    $region27: #{tpu_custom_call.1} parent=1 // pred_check_branch
      %183 = sbr.rel (0) target = $region29
    $region28: #{tpu_custom_call.1} parent=1 // pred_region
      %184 = dma.done [#allocation4], 512
    $region29: #{tpu_custom_call.1} parent=1 // pred_fallthru
      _
    %185 = vsyncpa [#allocation3], 1
    %186 = vsyncpa [#allocation6], 1
    %187 = vsyncpa [#allocation4], 1

</llo_original>
